<compile_context>
chip_gen: v5e
topology: v5e:2x2
jax: 0.10.0
libtpu: 0.0.40
codegen_flags: <defaults>
</compile_context>

<pallas_src>
import functools

import jax
import jax.numpy as jnp
from jax import lax
from jax.experimental import pallas as pl
from jax.experimental.pallas import tpu as pltpu


# ----------------------------------------------------------------------------
# Model configuration (small synthetic sizes)
# ----------------------------------------------------------------------------
FUSION_DIM = 8          # cfg.model.fusion.output_dim -> backbone.input_dim
INIT_DIM = 8            # cfg.model.backbone.init_dim
FINE_DIM = 64           # intermediate encoder feature dim
COARSE_DIM = INIT_DIM * 16   # = 128, encoder coarse output / in_proj input
HIDDEN_DIM = 128        # cfg.model.gcn.hidden_dim
OUTPUT_DIM = 32         # cfg.model.backbone.output_dim
SCORE_PACK = 8          # lane-packed width for narrow score outputs

N_F_SRC, N_F_TGT = 64, 64      # fine points per cloud
N_C_SRC, N_C_TGT = 32, 32      # coarse points per cloud

_VMEM = pl.BlockSpec(memory_space=pltpu.MemorySpace.VMEM)
_SMEM = pl.BlockSpec(memory_space=pltpu.MemorySpace.SMEM)


# ----------------------------------------------------------------------------
# Kernel 1: fused fusion + encoder (fine feats + coarse-subsampled feats)
# ----------------------------------------------------------------------------
def _fine_encoder_kernel(pts_ref, fw_ref, fb_ref, e1w_ref, e1b_ref,
                         e2w_ref, e2b_ref, feats_f_ref, feats_c_ref,
                         *, nf_src, nc_src, nc_tgt):
    f32 = jnp.float32
    pts = pts_ref[...]
    # TODO(synk): FusionModule image branch not defined in reference;
    # points-only linear stand-in.
    h = jnp.maximum(
        jnp.dot(pts, fw_ref[...], preferred_element_type=f32) + fb_ref[...], 0.0)
    # TODO(synk): PointEncoder KPConv blocks not defined; MLP stand-in.
    f_f = jnp.maximum(
        jnp.dot(h, e1w_ref[...], preferred_element_type=f32) + e1b_ref[...], 0.0)
    feats_f_ref[...] = f_f
    # coarse subsample == static prefix slice per cloud (done in VMEM, no
    # host-side gather), then the coarse encoder level.
    fc_src = jnp.maximum(
        jnp.dot(f_f[:nc_src], e2w_ref[...], preferred_element_type=f32)
        + e2b_ref[...], 0.0)
    fc_tgt = jnp.maximum(
        jnp.dot(f_f[nf_src:nf_src + nc_tgt], e2w_ref[...],
                preferred_element_type=f32) + e2b_ref[...], 0.0)
    feats_c_ref[0:nc_src, :] = fc_src
    feats_c_ref[nc_src:, :] = fc_tgt


def pallas_fine_encoder(points_f, fw, fb, e1w, e1b, e2w, e2b,
                        *, nf_src, nc_src, nc_tgt):
    nf = points_f.shape[0]
    nc = nc_src + nc_tgt
    kern = functools.partial(_fine_encoder_kernel,
                             nf_src=nf_src, nc_src=nc_src, nc_tgt=nc_tgt)
    return pl.pallas_call(
        kern,
        out_shape=(jax.ShapeDtypeStruct((nf, e1w.shape[1]), jnp.float32),
                   jax.ShapeDtypeStruct((nc, e2w.shape[1]), jnp.float32)),
        in_specs=[_VMEM] * 7,
        out_specs=(_VMEM, _VMEM),
    )(points_f, fw, fb, e1w, e1b, e2w, e2b)


# ----------------------------------------------------------------------------
# Kernel 2: fused coarse pipeline + temperature-scaled cross attention
#   in_proj -> GCN block -> out_proj -> score_proj -> L2-norm -> cross scores
#   src and tgt processed stacked (shared weights DMA'd once).
# ----------------------------------------------------------------------------
def _coarse_pipeline_kernel(inv_temp_ref, feats_ref, pts_ref,
                            ipw_ref, ipb_ref,
                            g1wf_ref, g1wp_ref, g1b_ref,
                            g2w_ref, g2b_ref,
                            opw_ref, opb_ref,
                            spw_ref, spb_ref,
                            feats_out_ref, spack_ref,
                            *, nc_src):
    f32 = jnp.float32
    x = feats_ref[...]
    pts = pts_ref[...]

    # in_proj (1x1 conv == matmul)
    h = jnp.dot(x, ipw_ref[...], preferred_element_type=f32) + ipb_ref[...]

    # TODO(synk): GCN kNN graph attention not defined in reference; residual
    # MLP stand-in.  The feature/point weight split replaces the host-side
    # concat([f, p], axis=1) with two matmuls inside the kernel.
    t = (jnp.dot(h, g1wf_ref[...], preferred_element_type=f32)
         + jnp.dot(pts, g1wp_ref[...], preferred_element_type=f32)
         + g1b_ref[...])
    t = jnp.maximum(t, 0.0)
    h = h + jnp.dot(t, g2w_ref[...], preferred_element_type=f32) + g2b_ref[...]

    # out_proj
    f = jnp.dot(h, opw_ref[...], preferred_element_type=f32) + opb_ref[...]
    feats_out_ref[...] = f

    # score_proj, lane-packed: only column 0 of spw/spb is non-zero.
    s = jnp.dot(f, spw_ref[...], preferred_element_type=f32) + spb_ref[...]

    # L2 normalise (rsqrt -> EUP, no sqrt+divide chain)
    fn = f * lax.rsqrt(jnp.sum(f * f, axis=1, keepdims=True) + 1e-24)
    src_n = fn[:nc_src]
    tgt_n = fn[nc_src:]
    src_s = s[:nc_src, 0:1]
    tgt_s = s[nc_src:, 0:1]

    # attention = <src_n, tgt_n> * (1/temperature); transpose-free dot_general,
    # scalar broadcast multiply from SMEM instead of a per-element divide.
    att = lax.dot_general(src_n, tgt_n, (((1,), (1,)), ((), ())),
                          preferred_element_type=f32) * inv_temp_ref[0, 0]

    # softmax over the tgt axis (rows of att)
    e_r = jnp.exp(att - jnp.max(att, axis=1, keepdims=True))
    p_src = e_r * pl.reciprocal(jnp.sum(e_r, axis=1, keepdims=True), approx=True)
    cross_src = jnp.dot(p_src, tgt_s, preferred_element_type=f32)      # (Ns, 1)

    # softmax over the src axis (columns of att) == softmax(att.T, dim=1)
    e_c = jnp.exp(att - jnp.max(att, axis=0, keepdims=True))
    p_tgt = e_c * pl.reciprocal(jnp.sum(e_c, axis=0, keepdims=True), approx=True)
    cross_tgt = lax.dot_general(p_tgt, src_s, (((0,), (0,)), ((), ())),
                                preferred_element_type=f32)            # (Nt, 1)

    # pack [score, cross_score, 0, ...] into one lane-packed (Nc, 8) output
    pack = s.shape[1]
    nc_tgt = s.shape[0] - nc_src
    col_s = lax.broadcasted_iota(jnp.int32, (nc_src, pack), 1)
    col_t = lax.broadcasted_iota(jnp.int32, (nc_tgt, pack), 1)
    spack_ref[0:nc_src, :] = jnp.where(
        col_s == 1, jnp.broadcast_to(cross_src, (nc_src, pack)), s[:nc_src])
    spack_ref[nc_src:, :] = jnp.where(
        col_t == 1, jnp.broadcast_to(cross_tgt, (nc_tgt, pack)), s[nc_src:])


def pallas_coarse_pipeline(inv_temp, feats_c, points_c,
                           ipw, ipb, g1wf, g1wp, g1b, g2w, g2b,
                           opw, opb, spw, spb, *, nc_src):
    nc = feats_c.shape[0]
    kern = functools.partial(_coarse_pipeline_kernel, nc_src=nc_src)
    return pl.pallas_call(
        kern,
        out_shape=(jax.ShapeDtypeStruct((nc, opw.shape[1]), jnp.float32),
                   jax.ShapeDtypeStruct((nc, spw.shape[1]), jnp.float32)),
        in_specs=[_SMEM] + [_VMEM] * 13,
        out_specs=(_VMEM, _VMEM),
    )(inv_temp, feats_c, points_c, ipw, ipb, g1wf, g1wp, g1b,
      g2w, g2b, opw, opb, spw, spb)


# ----------------------------------------------------------------------------
# Kernel 3: fused decoder (NN upsample + linear with split weights) + head
# ----------------------------------------------------------------------------
def _decoder_head_kernel(featsf_ref, cfeat_ref, spack_ref,
                         wds_ref, wdc_ref, wdf_ref, bd_ref,
                         feats_ref, head_ref,
                         *, nf_src, nc_src, out_dim):
    f32 = jnp.float32
    nf = featsf_ref.shape[0]
    nc = cfeat_ref.shape[0]
    nf_tgt = nf - nf_src
    nc_tgt = nc - nc_src
    up_src = nf_src // nc_src
    up_tgt = nf_tgt // nc_tgt

    # TODO(synk): PointDecoder not defined in reference; nearest-neighbour
    # upsample + linear stand-in.  The coarse rows are projected first so the
    # upsample runs on the narrow (Nc, OUT+2) tensor; the upsample itself is a
    # static 0/1 matrix built from iotas (no integer divide, no gather, no
    # host-side concat) and applied on the MXU.
    c_proj = (jnp.dot(cfeat_ref[...], wdc_ref[...], preferred_element_type=f32)
              + jnp.dot(spack_ref[...], wds_ref[...], preferred_element_type=f32))

    row = lax.broadcasted_iota(jnp.int32, (nf, nc), 0)
    col = lax.broadcasted_iota(jnp.int32, (nf, nc), 1)
    r2 = row - nf_src
    c2 = col - nc_src
    sel_src = (row < nf_src) & (row >= up_src * col) & (row < up_src * (col + 1))
    sel_tgt = ((row >= nf_src) & (col >= nc_src)
               & (r2 >= up_tgt * c2) & (r2 < up_tgt * (c2 + 1)))
    upmat = jnp.where(sel_src | sel_tgt, 1.0, 0.0).astype(f32)

    out = (jnp.dot(upmat, c_proj, preferred_element_type=f32)
           + jnp.dot(featsf_ref[...], wdf_ref[...], preferred_element_type=f32)
           + bd_ref[...])

    # head: L2-normalised descriptors + sigmoid overlap / saliency, packed
    feat = out[:, :out_dim]
    feats_ref[...] = feat * lax.rsqrt(
        jnp.sum(feat * feat, axis=1, keepdims=True) + 1e-24)

    overlap = 1.0 / (1.0 + jnp.exp(-out[:, out_dim:out_dim + 1]))
    saliency = 1.0 / (1.0 + jnp.exp(-out[:, out_dim + 1:out_dim + 2]))
    pack = head_ref.shape[1]
    col8 = lax.broadcasted_iota(jnp.int32, (nf, pack), 1)
    ov_b = jnp.broadcast_to(overlap, (nf, pack))
    sa_b = jnp.broadcast_to(saliency, (nf, pack))
    head_ref[...] = jnp.where(col8 == 0, ov_b,
                              jnp.where(col8 == 1, sa_b,
                                        jnp.where(col8 == 2, ov_b * sa_b, 0.0)))


def pallas_decoder_head(feats_f, feats_c, spack, wds, wdc, wdf, bd,
                        *, nf_src, nc_src, out_dim):
    nf = feats_f.shape[0]
    kern = functools.partial(_decoder_head_kernel,
                             nf_src=nf_src, nc_src=nc_src, out_dim=out_dim)
    return pl.pallas_call(
        kern,
        out_shape=(jax.ShapeDtypeStruct((nf, out_dim), jnp.float32),
                   jax.ShapeDtypeStruct((nf, SCORE_PACK), jnp.float32)),
        in_specs=[_VMEM] * 7,
        out_specs=(_VMEM, _VMEM),
    )(feats_f, feats_c, spack, wds, wdc, wdf, bd)


# ----------------------------------------------------------------------------
# Deterministic parameters (split / padded so the kernels never need host
# concats or lane-width-1 weight columns)
# ----------------------------------------------------------------------------
def make_params():
    key = jax.random.PRNGKey(42)

    def nxt():
        nonlocal key
        key, sub = jax.random.split(key)
        return sub

    def lin(cin, cout, scale=0.05):
        w = scale * jax.random.normal(nxt(), (cin, cout), jnp.float32)
        b = scale * jax.random.normal(nxt(), (1, cout), jnp.float32)
        return w, b

    p = {}
    p["epsilon"] = jnp.float32(-5.0)                    # nn.Parameter(-5.0)
    p["fusion"] = lin(3, FUSION_DIM)                    # FusionModule stand-in
    p["enc1"] = lin(FUSION_DIM, FINE_DIM)               # PointEncoder stand-in
    p["enc2"] = lin(FINE_DIM, COARSE_DIM)
    p["in_proj"] = lin(COARSE_DIM, HIDDEN_DIM)          # Conv1d(init*16, hidden, 1)

    # GCN stand-in: gcn1 weight split into feature / point row blocks
    g1wf, g1b = lin(HIDDEN_DIM, HIDDEN_DIM)
    g1wp, _ = lin(3, HIDDEN_DIM)
    p["gcn1"] = (g1wf, g1wp, g1b)
    p["gcn2"] = lin(HIDDEN_DIM, HIDDEN_DIM)
    p["out_proj"] = lin(HIDDEN_DIM, HIDDEN_DIM)         # Conv1d(hidden, hidden, 1)

    # score_proj padded (HIDDEN,1)->(HIDDEN,SCORE_PACK) so the kernel emits a
    # lane-packed score slab instead of an (N,1) output.
    spw, spb = lin(HIDDEN_DIM, 1)
    p["score_proj"] = (jnp.pad(spw, ((0, 0), (0, SCORE_PACK - 1))),
                       jnp.pad(spb, ((0, 0), (0, SCORE_PACK - 1))))

    # decoder: weight split into [scores|coarse feats|fine feats] row blocks;
    # the 2-row score block is padded to SCORE_PACK rows to match the packed
    # score slab produced by kernel 2.
    wds, bd = lin(2, OUTPUT_DIM + 2)
    wdc, _ = lin(HIDDEN_DIM, OUTPUT_DIM + 2)
    wdf, _ = lin(FINE_DIM, OUTPUT_DIM + 2)
    wds8 = jnp.pad(wds, ((0, SCORE_PACK - 2), (0, 0)))
    p["decoder"] = (wds8, wdc, wdf, bd)
    return p


# ----------------------------------------------------------------------------
# Forward pass (mirrors OverlapPredator.forward)
# ----------------------------------------------------------------------------
def overlap_predator_forward(params, data_dict):
    src_length_c = data_dict["lengths"][-1][0]
    tgt_length_c = data_dict["lengths"][-1][1]
    src_length_f = data_dict["lengths"][0][0]
    points_c = data_dict["points"][-1]
    points_f = data_dict["points"][0]

    src_points_f = points_f[:src_length_f]
    tgt_points_f = points_f[src_length_f:]
    out = {"src_points": src_points_f, "tgt_points": tgt_points_f}

    # (1) fused fusion + encoder; src+tgt processed stacked, coarse gather
    #     expressed as static row slices inside the kernel.
    fw, fb = params["fusion"]
    e1w, e1b = params["enc1"]
    e2w, e2b = params["enc2"]
    feats_f, feats_c = pallas_fine_encoder(
        points_f, fw, fb, e1w, e1b, e2w, e2b,
        nf_src=src_length_f, nc_src=src_length_c, nc_tgt=tgt_length_c)

    # (2) fused coarse pipeline + cross attention.  1/temperature goes to SMEM.
    inv_temp = (1.0 / (jnp.exp(params["epsilon"]) + 0.03)
                ).reshape(1, 1).astype(jnp.float32)
    ipw, ipb = params["in_proj"]
    g1wf, g1wp, g1b = params["gcn1"]
    g2w, g2b = params["gcn2"]
    opw, opb = params["out_proj"]
    spw, spb = params["score_proj"]
    feats_c_out, spack_c = pallas_coarse_pipeline(
        inv_temp, feats_c, points_c,
        ipw, ipb, g1wf, g1wp, g1b, g2w, g2b, opw, opb, spw, spb,
        nc_src=src_length_c)

    # (3) fused decoder + head.
    wds, wdc, wdf, bd = params["decoder"]
    feats_n, head_pack = pallas_decoder_head(
        feats_f, feats_c_out, spack_c, wds, wdc, wdf, bd,
        nf_src=src_length_f, nc_src=src_length_c, out_dim=OUTPUT_DIM)

    overlap = head_pack[:, 0]
    saliency = head_pack[:, 1]
    scores = head_pack[:, 2]

    out["src_feats"] = feats_n[:src_length_f]
    out["tgt_feats"] = feats_n[src_length_f:]
    out["src_overlap_scores"] = overlap[:src_length_f]
    out["tgt_overlap_scores"] = overlap[src_length_f:]
    out["src_saliency_scores"] = saliency[:src_length_f]
    out["tgt_saliency_scores"] = saliency[src_length_f:]
    out["src_scores"] = scores[:src_length_f]
    out["tgt_scores"] = scores[src_length_f:]
    return out


# ----------------------------------------------------------------------------
# Driver
# ----------------------------------------------------------------------------
if __name__ == "__main__":
    params = make_params()

    key = jax.random.PRNGKey(0)
    k1, k2, k3, k4, k5, k6, k7 = jax.random.split(key, 7)

    points_f = jax.random.normal(k1, (N_F_SRC + N_F_TGT, 3), jnp.float32)
    points_c = jax.random.normal(k2, (N_C_SRC + N_C_TGT, 3), jnp.float32)

    data_dict = {
        "points": [points_f, points_c],
        "lengths": [(N_F_SRC, N_F_TGT), (N_C_SRC, N_C_TGT)],
        # image / calibration inputs exist for interface parity; the fusion
        # stand-in (see TODO above) does not consume them.
        "src_images": jax.random.normal(k3, (1, 3, 16, 16), jnp.float32),
        "tgt_images": jax.random.normal(k4, (1, 3, 16, 16), jnp.float32),
        "src_transforms": jax.random.normal(k5, (4, 4), jnp.float32),
        "tgt_transforms": jax.random.normal(k6, (4, 4), jnp.float32),
        "intrinsics": jax.random.normal(k7, (3, 3), jnp.float32),
    }

    output_dict = overlap_predator_forward(params, data_dict)
    jax.block_until_ready(output_dict)

    # Sanity checks on shapes / values.
    assert output_dict["src_feats"].shape == (N_F_SRC, OUTPUT_DIM)
    assert output_dict["tgt_feats"].shape == (N_F_TGT, OUTPUT_DIM)
    assert output_dict["src_scores"].shape == (N_F_SRC,)
    assert output_dict["tgt_overlap_scores"].shape == (N_F_TGT,)
    assert bool(jnp.all(jnp.isfinite(output_dict["src_feats"])))
    assert bool(jnp.all(jnp.isfinite(output_dict["tgt_feats"])))
    assert bool(jnp.all((output_dict["src_scores"] >= 0.0)
                        & (output_dict["src_scores"] <= 1.0)))
    assert bool(jnp.all((output_dict["tgt_scores"] >= 0.0)
                        & (output_dict["tgt_scores"] <= 1.0)))
    nrm = jnp.linalg.norm(output_dict["src_feats"], axis=1)
    assert bool(jnp.all(jnp.abs(nrm - 1.0) < 1e-2))

    print("KERNEL_OK")
</pallas_src>

<mosaic_0001>
module attributes {stable_mosaic.version = 11 : i64} {
  func.func @_fine_encoder_kernel(%arg0: memref<128x3xf32, #tpu.memory_space<vmem>>, %arg1: memref<3x8xf32, #tpu.memory_space<vmem>>, %arg2: memref<1x8xf32, #tpu.memory_space<vmem>>, %arg3: memref<8x64xf32, #tpu.memory_space<vmem>>, %arg4: memref<1x64xf32, #tpu.memory_space<vmem>>, %arg5: memref<64x128xf32, #tpu.memory_space<vmem>>, %arg6: memref<1x128xf32, #tpu.memory_space<vmem>>, %arg7: memref<128x64xf32, #tpu.memory_space<vmem>>, %arg8: memref<64x128xf32, #tpu.memory_space<vmem>>) attributes {dimension_semantics = [], scalar_prefetch = 0 : i64, scratch_operands = 0 : i64, tpu.core_type = #tpu.core_type<tc>} {
    %c0 = arith.constant 0 : index
    %c0_0 = arith.constant 0 : index
    %0 = vector.load %arg0[%c0, %c0_0] : memref<128x3xf32, #tpu.memory_space<vmem>>, vector<128x3xf32>
    %c0_1 = arith.constant 0 : index
    %c0_2 = arith.constant 0 : index
    %1 = vector.load %arg1[%c0_1, %c0_2] : memref<3x8xf32, #tpu.memory_space<vmem>>, vector<3x8xf32>
    %cst = arith.constant dense<0.000000e+00> : vector<128x8xf32>
    %2 = tpu.matmul %0, %1, %cst {dimension_numbers = #tpu.dot_dimension_numbers<[1], [0], [0], [1], [0, 0, 1, 1], [], []>} : vector<128x3xf32>, vector<3x8xf32>, vector<128x8xf32> -> vector<128x8xf32>
    %c0_3 = arith.constant 0 : index
    %c0_4 = arith.constant 0 : index
    %3 = vector.load %arg2[%c0_3, %c0_4] : memref<1x8xf32, #tpu.memory_space<vmem>>, vector<1x8xf32>
    %4 = vector.broadcast %3 : vector<1x8xf32> to vector<128x8xf32>
    %5 = arith.addf %2, %4 : vector<128x8xf32>
    %cst_5 = arith.constant 0.000000e+00 : f32
    %6 = vector.broadcast %cst_5 : f32 to vector<128x8xf32>
    %7 = arith.maximumf %5, %6 : vector<128x8xf32>
    %c0_6 = arith.constant 0 : index
    %c0_7 = arith.constant 0 : index
    %8 = vector.load %arg3[%c0_6, %c0_7] : memref<8x64xf32, #tpu.memory_space<vmem>>, vector<8x64xf32>
    %cst_8 = arith.constant dense<0.000000e+00> : vector<128x64xf32>
    %9 = tpu.matmul %7, %8, %cst_8 {dimension_numbers = #tpu.dot_dimension_numbers<[1], [0], [0], [1], [0, 0, 1, 1], [], []>} : vector<128x8xf32>, vector<8x64xf32>, vector<128x64xf32> -> vector<128x64xf32>
    %c0_9 = arith.constant 0 : index
    %c0_10 = arith.constant 0 : index
    %10 = vector.load %arg4[%c0_9, %c0_10] : memref<1x64xf32, #tpu.memory_space<vmem>>, vector<1x64xf32>
    %11 = vector.broadcast %10 : vector<1x64xf32> to vector<128x64xf32>
    %12 = arith.addf %9, %11 : vector<128x64xf32>
    %cst_11 = arith.constant 0.000000e+00 : f32
    %13 = vector.broadcast %cst_11 : f32 to vector<128x64xf32>
    %14 = arith.maximumf %12, %13 : vector<128x64xf32>
    %c0_12 = arith.constant 0 : index
    %c0_13 = arith.constant 0 : index
    %15 = vector.load %arg7[%c0_12, %c0_13] : memref<128x64xf32, #tpu.memory_space<vmem>>, vector<128x64xf32>
    tpu.vector_store %arg7[%c0_12, %c0_13], %14 {strides = array<i32>} : memref<128x64xf32, #tpu.memory_space<vmem>>, vector<128x64xf32>,
    %16 = vector.extract_strided_slice %14 {offsets = [0, 0], sizes = [32, 64], strides = [1, 1]} : vector<128x64xf32> to vector<32x64xf32>
    %c0_14 = arith.constant 0 : index
    %c0_15 = arith.constant 0 : index
    %17 = vector.load %arg5[%c0_14, %c0_15] : memref<64x128xf32, #tpu.memory_space<vmem>>, vector<64x128xf32>
    %cst_16 = arith.constant dense<0.000000e+00> : vector<32x128xf32>
    %18 = tpu.matmul %16, %17, %cst_16 {dimension_numbers = #tpu.dot_dimension_numbers<[1], [0], [0], [1], [0, 0, 1, 1], [], []>} : vector<32x64xf32>, vector<64x128xf32>, vector<32x128xf32> -> vector<32x128xf32>
    %c0_17 = arith.constant 0 : index
    %c0_18 = arith.constant 0 : index
    %19 = vector.load %arg6[%c0_17, %c0_18] : memref<1x128xf32, #tpu.memory_space<vmem>>, vector<1x128xf32>
    %20 = vector.broadcast %19 : vector<1x128xf32> to vector<32x128xf32>
    %21 = arith.addf %18, %20 : vector<32x128xf32>
    %cst_19 = arith.constant 0.000000e+00 : f32
    %22 = vector.broadcast %cst_19 : f32 to vector<32x128xf32>
    %23 = arith.maximumf %21, %22 : vector<32x128xf32>
    %24 = vector.extract_strided_slice %14 {offsets = [64, 0], sizes = [32, 64], strides = [1, 1]} : vector<128x64xf32> to vector<32x64xf32>
    %c0_20 = arith.constant 0 : index
    %c0_21 = arith.constant 0 : index
    %25 = vector.load %arg5[%c0_20, %c0_21] : memref<64x128xf32, #tpu.memory_space<vmem>>, vector<64x128xf32>
    %cst_22 = arith.constant dense<0.000000e+00> : vector<32x128xf32>
    %26 = tpu.matmul %24, %25, %cst_22 {dimension_numbers = #tpu.dot_dimension_numbers<[1], [0], [0], [1], [0, 0, 1, 1], [], []>} : vector<32x64xf32>, vector<64x128xf32>, vector<32x128xf32> -> vector<32x128xf32>
    %c0_23 = arith.constant 0 : index
    %c0_24 = arith.constant 0 : index
    %27 = vector.load %arg6[%c0_23, %c0_24] : memref<1x128xf32, #tpu.memory_space<vmem>>, vector<1x128xf32>
    %28 = vector.broadcast %27 : vector<1x128xf32> to vector<32x128xf32>
    %29 = arith.addf %26, %28 : vector<32x128xf32>
    %cst_25 = arith.constant 0.000000e+00 : f32
    %30 = vector.broadcast %cst_25 : f32 to vector<32x128xf32>
    %31 = arith.maximumf %29, %30 : vector<32x128xf32>
    %c0_26 = arith.constant 0 : index
    %c0_27 = arith.constant 0 : index
    %32 = vector.load %arg8[%c0_26, %c0_27] : memref<64x128xf32, #tpu.memory_space<vmem>>, vector<32x128xf32>
    tpu.vector_store %arg8[%c0_26, %c0_27], %23 {strides = array<i32>} : memref<64x128xf32, #tpu.memory_space<vmem>>, vector<32x128xf32>,
    %c32 = arith.constant 32 : index
    %c0_28 = arith.constant 0 : index
    %33 = vector.load %arg8[%c32, %c0_28] : memref<64x128xf32, #tpu.memory_space<vmem>>, vector<32x128xf32>
    tpu.vector_store %arg8[%c32, %c0_28], %31 {strides = array<i32>} : memref<64x128xf32, #tpu.memory_space<vmem>>, vector<32x128xf32>,
    return
  }
}

</mosaic_0001>

<llo_original>
// kernel: tpu_custom_call.1
$region0: #{tpu_custom_call.1}
  #allocation0 [shape = 'u32[]', space=smem, size = 0x4, offset = 0x4, fixed_abs, tag = 'smem constant byte address 0x4 - core index']
  #allocation1 [shape = 'u32[72,128]{1,0:T(1,128)}', space=vmem, size = 0x9000, scoped, tag = 'internal scratch']
  %s0 = inlined_call_operand.vmem [shape: f32[128,3], index: 0, kind: input, shape index: {}]
  %s1 = inlined_call_operand.vmem [shape: f32[3,8], index: 1, kind: input, shape index: {}]
  %s2 = inlined_call_operand.vmem [shape: f32[1,8], index: 2, kind: input, shape index: {}]
  %s3 = inlined_call_operand.vmem [shape: f32[8,64], index: 3, kind: input, shape index: {}]
  %s4 = inlined_call_operand.vmem [shape: f32[1,64], index: 4, kind: input, shape index: {}]
  %s5 = inlined_call_operand.vmem [shape: f32[64,128], index: 5, kind: input, shape index: {}]
  %s6 = inlined_call_operand.vmem [shape: f32[1,128], index: 6, kind: input, shape index: {}]
  %s7 = inlined_call_operand.vmem [shape: f32[128,64], index: 7, kind: output, shape index: {0}]
  %s8 = inlined_call_operand.hbm [shape: f32[64,128], index: 8, kind: output, shape index: {1}]
  %9 = xla_tuple %s7, %s8
  %s10 = sld [smem:[#allocation0]]
  $region46: #{tpu_custom_call.1} parent=0
    _
  %s12 = ssub.s32 1, %s10
  %s13 = scalar_select 0, %s12, %s10
  $region1: #{tpu_custom_call.1} parent=0
    #allocation2 [shape = 'u8[32768]{0}', space=vmem, size = 0x8000, scoped, tag = 'output window, operand 1, single buffered']
    #allocation3 [shape = 's32[1]{0}', space=sflag, size = 0x4, scoped, tag = 'scoped memory for tpu_custom_call.1']
    %14 = vsyncpa [#allocation3], 0
    // Predicated region
    $region2: #{tpu_custom_call.1} parent=1 // pred_check
      _
    $region3: #{tpu_custom_call.1} parent=1 // pred_check_branch
      %16 = sbr.rel (0) target = $region5
    $region4: #{tpu_custom_call.1} parent=1 // pred_region
      _
    $region5: #{tpu_custom_call.1} parent=1 // pred_fallthru
      _
    // Predicated region
    $region6: #{tpu_custom_call.1} parent=1 // pred_check
      _
    $region7: #{tpu_custom_call.1} parent=1 // pred_check_branch
      %18 = sbr.rel (0) target = $region9
    $region8: #{tpu_custom_call.1} parent=1 // pred_region
      _
    $region9: #{tpu_custom_call.1} parent=1 // pred_fallthru
      _
    // Predicated region
    $region10: #{tpu_custom_call.1} parent=1 // pred_check
      _
    $region11: #{tpu_custom_call.1} parent=1 // pred_check_branch
      %20 = sbr.rel (0) target = $region13
    $region12: #{tpu_custom_call.1} parent=1 // pred_region
      _
    $region13: #{tpu_custom_call.1} parent=1 // pred_fallthru
      _
    // Predicated region
    $region14: #{tpu_custom_call.1} parent=1 // pred_check
      _
    $region15: #{tpu_custom_call.1} parent=1 // pred_check_branch
      %22 = sbr.rel (0) target = $region17
    $region16: #{tpu_custom_call.1} parent=1 // pred_region
      _
    $region17: #{tpu_custom_call.1} parent=1 // pred_fallthru
      _
    // Predicated region
    $region18: #{tpu_custom_call.1} parent=1 // pred_check
      _
    $region19: #{tpu_custom_call.1} parent=1 // pred_check_branch
      %24 = sbr.rel (0) target = $region21
    $region20: #{tpu_custom_call.1} parent=1 // pred_region
      _
    $region21: #{tpu_custom_call.1} parent=1 // pred_fallthru
      _
    // Predicated region
    $region22: #{tpu_custom_call.1} parent=1 // pred_check
      _
    $region23: #{tpu_custom_call.1} parent=1 // pred_check_branch
      %26 = sbr.rel (0) target = $region25
    $region24: #{tpu_custom_call.1} parent=1 // pred_region
      _
    $region25: #{tpu_custom_call.1} parent=1 // pred_fallthru
      _
    // Predicated region
    $region26: #{tpu_custom_call.1} parent=1 // pred_check
      _
    $region27: #{tpu_custom_call.1} parent=1 // pred_check_branch
      %28 = sbr.rel (0) target = $region29
    $region28: #{tpu_custom_call.1} parent=1 // pred_region
      _
    $region29: #{tpu_custom_call.1} parent=1 // pred_fallthru
      _
    %v29 = vld [vmem:[%s0] sm:$0xff]
    %v30 = vld [vmem:[%s0 + $0x8] sm:$0xff]
    %v31 = vld [vmem:[%s0 + $0x10] sm:$0xff]
    %v32 = vld [vmem:[%s0 + $0x18] sm:$0xff]
    %v33 = vld [vmem:[%s0 + $0x20] sm:$0xff]
    %v34 = vld [vmem:[%s0 + $0x28] sm:$0xff]
    %v35 = vld [vmem:[%s0 + $0x30] sm:$0xff]
    %v36 = vld [vmem:[%s0 + $0x38] sm:$0xff]
    %v37 = vld [vmem:[%s0 + $0x40] sm:$0xff]
    %v38 = vld [vmem:[%s0 + $0x48] sm:$0xff]
    %v39 = vld [vmem:[%s0 + $0x50] sm:$0xff]
    %v40 = vld [vmem:[%s0 + $0x58] sm:$0xff]
    %v41 = vld [vmem:[%s0 + $0x60] sm:$0xff]
    %v42 = vld [vmem:[%s0 + $0x68] sm:$0xff]
    %v43 = vld [vmem:[%s0 + $0x70] sm:$0xff]
    %v44 = vld [vmem:[%s0 + $0x78] sm:$0xff]
    %v45 = vld [vmem:[%s1] sm:$0x7]
    %v46 = vld [vmem:[%s2] sm:$0x1]
    %v48 = vperm.slane %v46, 0
    %vm50 = vcmask 23552
    %v52 = vsel %vm50, %v29, 0
    %v55 = vsel %vm50, %v30, 0
    %v58 = vsel %vm50, %v31, 0
    %v61 = vsel %vm50, %v32, 0
    %v64 = vsel %vm50, %v33, 0
    %v67 = vsel %vm50, %v34, 0
    %v70 = vsel %vm50, %v35, 0
    %v73 = vsel %vm50, %v36, 0
    %v76 = vsel %vm50, %v37, 0
    %v79 = vsel %vm50, %v38, 0
    %v82 = vsel %vm50, %v39, 0
    %v85 = vsel %vm50, %v40, 0
    %v88 = vsel %vm50, %v41, 0
    %v91 = vsel %vm50, %v42, 0
    %v94 = vsel %vm50, %v43, 0
    %v97 = vsel %vm50, %v44, 0
    %vm99 = vcmask 1042432
    %v101 = vsel %vm99, %v45, 0
    %103 = vmatpush.msra.mxu0 0.0
    %104 = vmatpush.msra.mxu0 0.0
    %105 = vmatpush.msra.mxu0 0.0
    %106 = vmatpush.msra.mxu0 0.0
    %107 = vmatpush.msra.mxu0 0.0
    %108 = vmatpush.msra.mxu0 0.0
    %109 = vmatpush.msra.mxu0 0.0
    %110 = vmatpush.msra.mxu0 0.0
    %111 = vmatpush.msra.mxu0 0.0
    %112 = vmatpush.msra.mxu0 0.0
    %113 = vmatpush.msra.mxu0 0.0
    %114 = vmatpush.msra.mxu0 0.0
    %115 = vmatpush.msra.mxu0 0.0
    %116 = vmatpush.msra.mxu0 0.0
    %117 = vmatpush.msra.mxu0 0.0
    %118 = vmatpush.msra.mxu0 %v101
    %119 = vmatmul.f32.gmra.mxu0 %v52
    %v120 = vpop.f32.mrf.mxu0
    %v121 = vadd.f32 %v48, %v120
    %122 = vmatmul.f32.gmra.mxu0 %v55
    %v123 = vpop.f32.mrf.mxu0
    %v124 = vadd.f32 %v48, %v123
    %125 = vmatmul.f32.gmra.mxu0 %v58
    %v126 = vpop.f32.mrf.mxu0
    %v127 = vadd.f32 %v48, %v126
    %128 = vmatmul.f32.gmra.mxu0 %v61
    %v129 = vpop.f32.mrf.mxu0
    %v130 = vadd.f32 %v48, %v129
    %131 = vmatmul.f32.gmra.mxu0 %v64
    %v132 = vpop.f32.mrf.mxu0
    %v133 = vadd.f32 %v48, %v132
    %134 = vmatmul.f32.gmra.mxu0 %v67
    %v135 = vpop.f32.mrf.mxu0
    %v136 = vadd.f32 %v48, %v135
    %137 = vmatmul.f32.gmra.mxu0 %v70
    %v138 = vpop.f32.mrf.mxu0
    %v139 = vadd.f32 %v48, %v138
    %140 = vmatmul.f32.gmra.mxu0 %v73
    %v141 = vpop.f32.mrf.mxu0
    %v142 = vadd.f32 %v48, %v141
    %143 = vmatmul.f32.gmra.mxu0 %v76
    %v144 = vpop.f32.mrf.mxu0
    %v145 = vadd.f32 %v48, %v144
    %146 = vmatmul.f32.gmra.mxu0 %v79
    %v147 = vpop.f32.mrf.mxu0
    %v148 = vadd.f32 %v48, %v147
    %149 = vmatmul.f32.gmra.mxu0 %v82
    %v150 = vpop.f32.mrf.mxu0
    %v151 = vadd.f32 %v48, %v150
    %152 = vmatmul.f32.gmra.mxu0 %v85
    %v153 = vpop.f32.mrf.mxu0
    %v154 = vadd.f32 %v48, %v153
    %155 = vmatmul.f32.gmra.mxu0 %v88
    %v156 = vpop.f32.mrf.mxu0
    %v157 = vadd.f32 %v48, %v156
    %158 = vmatmul.f32.gmra.mxu0 %v91
    %v159 = vpop.f32.mrf.mxu0
    %v160 = vadd.f32 %v48, %v159
    %161 = vmatmul.f32.gmra.mxu0 %v94
    %v162 = vpop.f32.mrf.mxu0
    %v163 = vadd.f32 %v48, %v162
    %164 = vmatmul.f32.gmra.mxu0 %v97
    %v165 = vpop.f32.mrf.mxu0
    %v166 = vadd.f32 %v48, %v165
    %167 = vdwg.mxu0
    %v168 = vmax.f32 %v121, 0.0
    %v169 = vmax.f32 %v124, 0.0
    %v170 = vmax.f32 %v127, 0.0
    %v171 = vmax.f32 %v130, 0.0
    %v172 = vmax.f32 %v133, 0.0
    %v173 = vmax.f32 %v136, 0.0
    %v174 = vmax.f32 %v139, 0.0
    %v175 = vmax.f32 %v142, 0.0
    %v176 = vmax.f32 %v145, 0.0
    %v177 = vmax.f32 %v148, 0.0
    %v178 = vmax.f32 %v151, 0.0
    %v179 = vmax.f32 %v154, 0.0
    %v180 = vmax.f32 %v157, 0.0
    %v181 = vmax.f32 %v160, 0.0
    %v182 = vmax.f32 %v163, 0.0
    %v183 = vmax.f32 %v166, 0.0
    %v184 = vld [vmem:[%s3] sm:$0xff]
    %v185 = vld [vmem:[%s4] sm:$0x1]
    %v187 = vperm.slane %v185, 0
    %vm189 = vcmask 64512
    %v191 = vsel %vm189, %v168, 0
    %v194 = vsel %vm189, %v169, 0
    %v197 = vsel %vm189, %v170, 0
    %v200 = vsel %vm189, %v171, 0
    %v203 = vsel %vm189, %v172, 0
    %v206 = vsel %vm189, %v173, 0
    %v209 = vsel %vm189, %v174, 0
    %v212 = vsel %vm189, %v175, 0
    %v215 = vsel %vm189, %v176, 0
    %v218 = vsel %vm189, %v177, 0
    %v221 = vsel %vm189, %v178, 0
    %v224 = vsel %vm189, %v179, 0
    %v227 = vsel %vm189, %v180, 0
    %v230 = vsel %vm189, %v181, 0
    %v233 = vsel %vm189, %v182, 0
    %v236 = vsel %vm189, %v183, 0
    %238 = vmatpush.msra.mxu0 0.0
    %239 = vmatpush.msra.mxu0 0.0
    %240 = vmatpush.msra.mxu0 0.0
    %241 = vmatpush.msra.mxu0 0.0
    %242 = vmatpush.msra.mxu0 0.0
    %243 = vmatpush.msra.mxu0 0.0
    %244 = vmatpush.msra.mxu0 0.0
    %245 = vmatpush.msra.mxu0 0.0
    %246 = vmatpush.msra.mxu0 0.0
    %247 = vmatpush.msra.mxu0 0.0
    %248 = vmatpush.msra.mxu0 0.0
    %249 = vmatpush.msra.mxu0 0.0
    %250 = vmatpush.msra.mxu0 0.0
    %251 = vmatpush.msra.mxu0 0.0
    %252 = vmatpush.msra.mxu0 0.0
    %253 = vmatpush.msra.mxu0 %v184
    %254 = vmatmul.f32.gmra.mxu0 %v191
    %v255 = vpop.f32.mrf.mxu0
    %v256 = vadd.f32 %v187, %v255
    %257 = vmatmul.f32.gmra.mxu0 %v194
    %v258 = vpop.f32.mrf.mxu0
    %v259 = vadd.f32 %v187, %v258
    %260 = vmatmul.f32.gmra.mxu0 %v197
    %v261 = vpop.f32.mrf.mxu0
    %v262 = vadd.f32 %v187, %v261
    %263 = vmatmul.f32.gmra.mxu0 %v200
    %v264 = vpop.f32.mrf.mxu0
    %v265 = vadd.f32 %v187, %v264
    %266 = vmatmul.f32.gmra.mxu0 %v203
    %v267 = vpop.f32.mrf.mxu0
    %v268 = vadd.f32 %v187, %v267
    %269 = vmatmul.f32.gmra.mxu0 %v206
    %v270 = vpop.f32.mrf.mxu0
    %v271 = vadd.f32 %v187, %v270
    %272 = vmatmul.f32.gmra.mxu0 %v209
    %v273 = vpop.f32.mrf.mxu0
    %v274 = vadd.f32 %v187, %v273
    %275 = vmatmul.f32.gmra.mxu0 %v212
    %v276 = vpop.f32.mrf.mxu0
    %v277 = vadd.f32 %v187, %v276
    %278 = vmatmul.f32.gmra.mxu0 %v215
    %v279 = vpop.f32.mrf.mxu0
    %v280 = vadd.f32 %v187, %v279
    %281 = vmatmul.f32.gmra.mxu0 %v218
    %v282 = vpop.f32.mrf.mxu0
    %v283 = vadd.f32 %v187, %v282
    %284 = vmatmul.f32.gmra.mxu0 %v221
    %v285 = vpop.f32.mrf.mxu0
    %v286 = vadd.f32 %v187, %v285
    %287 = vmatmul.f32.gmra.mxu0 %v224
    %v288 = vpop.f32.mrf.mxu0
    %v289 = vadd.f32 %v187, %v288
    %290 = vmatmul.f32.gmra.mxu0 %v227
    %v291 = vpop.f32.mrf.mxu0
    %v292 = vadd.f32 %v187, %v291
    %293 = vmatmul.f32.gmra.mxu0 %v230
    %v294 = vpop.f32.mrf.mxu0
    %v295 = vadd.f32 %v187, %v294
    %296 = vmatmul.f32.gmra.mxu0 %v233
    %v297 = vpop.f32.mrf.mxu0
    %v298 = vadd.f32 %v187, %v297
    %299 = vmatmul.f32.gmra.mxu0 %v236
    %v300 = vpop.f32.mrf.mxu0
    %v301 = vadd.f32 %v187, %v300
    %302 = vdwg.mxu0
    %v303 = vmax.f32 %v256, 0.0
    %v304 = vmax.f32 %v259, 0.0
    %v305 = vmax.f32 %v262, 0.0
    %v306 = vmax.f32 %v265, 0.0
    %v307 = vmax.f32 %v268, 0.0
    %v308 = vmax.f32 %v271, 0.0
    %v309 = vmax.f32 %v274, 0.0
    %v310 = vmax.f32 %v277, 0.0
    %v311 = vmax.f32 %v280, 0.0
    %v312 = vmax.f32 %v283, 0.0
    %v313 = vmax.f32 %v286, 0.0
    %v314 = vmax.f32 %v289, 0.0
    %v315 = vmax.f32 %v292, 0.0
    %v316 = vmax.f32 %v295, 0.0
    %v317 = vmax.f32 %v298, 0.0
    %v318 = vmax.f32 %v301, 0.0
    %vm319 = vcmask 523264
    %320 = vst.msk [vmem:[%s7] sm:$0xff] %vm319, %v303
    %321 = vst.msk [vmem:[%s7 + $0x8] sm:$0xff] %vm319, %v304
    %322 = vst.msk [vmem:[%s7 + $0x10] sm:$0xff] %vm319, %v305
    %323 = vst.msk [vmem:[%s7 + $0x18] sm:$0xff] %vm319, %v306
    %324 = vst.msk [vmem:[%s7 + $0x20] sm:$0xff] %vm319, %v307
    %325 = vst.msk [vmem:[%s7 + $0x28] sm:$0xff] %vm319, %v308
    %326 = vst.msk [vmem:[%s7 + $0x30] sm:$0xff] %vm319, %v309
    %327 = vst.msk [vmem:[%s7 + $0x38] sm:$0xff] %vm319, %v310
    %328 = vst.msk [vmem:[%s7 + $0x40] sm:$0xff] %vm319, %v311
    %329 = vst.msk [vmem:[%s7 + $0x48] sm:$0xff] %vm319, %v312
    %330 = vst.msk [vmem:[%s7 + $0x50] sm:$0xff] %vm319, %v313
    %331 = vst.msk [vmem:[%s7 + $0x58] sm:$0xff] %vm319, %v314
    %332 = vst.msk [vmem:[%s7 + $0x60] sm:$0xff] %vm319, %v315
    %333 = vst.msk [vmem:[%s7 + $0x68] sm:$0xff] %vm319, %v316
    %334 = vst.msk [vmem:[%s7 + $0x70] sm:$0xff] %vm319, %v317
    %335 = vst.msk [vmem:[%s7 + $0x78] sm:$0xff] %vm319, %v318
    %v336 = vld [vmem:[%s5] sm:$0xff]
    %v337 = vld [vmem:[%s5 + $0x8] sm:$0xff]
    %v338 = vld [vmem:[%s5 + $0x10] sm:$0xff]
    %v339 = vld [vmem:[%s5 + $0x18] sm:$0xff]
    %v340 = vld [vmem:[%s5 + $0x20] sm:$0xff]
    %v341 = vld [vmem:[%s5 + $0x28] sm:$0xff]
    %v342 = vld [vmem:[%s5 + $0x30] sm:$0xff]
    %v343 = vld [vmem:[%s5 + $0x38] sm:$0xff]
    %v344 = vld [vmem:[%s6] sm:$0x1]
    %v346 = vperm.slane %v344, 0
    %v349 = vsel %vm319, %v303, 0
    %v352 = vsel %vm319, %v304, 0
    %v355 = vsel %vm319, %v305, 0
    %v358 = vsel %vm319, %v306, 0
    %360 = vmatpush.msra.mxu0 0.0
    %361 = vmatpush.msra.mxu0 0.0
    %362 = vmatpush.msra.mxu0 0.0
    %363 = vmatpush.msra.mxu0 0.0
    %364 = vmatpush.msra.mxu0 0.0
    %365 = vmatpush.msra.mxu0 0.0
    %366 = vmatpush.msra.mxu0 0.0
    %367 = vmatpush.msra.mxu0 0.0
    %368 = vmatpush.msra.mxu0 %v343
    %369 = vmatpush.msra.mxu0 %v342
    %370 = vmatpush.msra.mxu0 %v341
    %371 = vmatpush.msra.mxu0 %v340
    %372 = vmatpush.msra.mxu0 %v339
    %373 = vmatpush.msra.mxu0 %v338
    %374 = vmatpush.msra.mxu0 %v337
    %375 = vmatpush.msra.mxu0 %v336
    %376 = vmatmul.f32.gmra.mxu0 %v349
    %v377 = vpop.f32.mrf.mxu0
    %v378 = vadd.f32 %v346, %v377
    %379 = vmatmul.f32.gmra.mxu0 %v352
    %v380 = vpop.f32.mrf.mxu0
    %v381 = vadd.f32 %v346, %v380
    %382 = vmatmul.f32.gmra.mxu0 %v355
    %v383 = vpop.f32.mrf.mxu0
    %v384 = vadd.f32 %v346, %v383
    %385 = vmatmul.f32.gmra.mxu0 %v358
    %v386 = vpop.f32.mrf.mxu0
    %v387 = vadd.f32 %v346, %v386
    %388 = vdwg.mxu0
    %v389 = vmax.f32 %v378, 0.0
    %v390 = vmax.f32 %v381, 0.0
    %v391 = vmax.f32 %v384, 0.0
    %v392 = vmax.f32 %v387, 0.0
    %v394 = vsel %vm319, %v311, 0
    %v397 = vsel %vm319, %v312, 0
    %v400 = vsel %vm319, %v313, 0
    %v403 = vsel %vm319, %v314, 0
    %405 = vmatpush.msra.mxu0 0.0
    %406 = vmatpush.msra.mxu0 0.0
    %407 = vmatpush.msra.mxu0 0.0
    %408 = vmatpush.msra.mxu0 0.0
    %409 = vmatpush.msra.mxu0 0.0
    %410 = vmatpush.msra.mxu0 0.0
    %411 = vmatpush.msra.mxu0 0.0
    %412 = vmatpush.msra.mxu0 0.0
    %413 = vmatpush.msra.mxu0 %v343
    %414 = vmatpush.msra.mxu0 %v342
    %415 = vmatpush.msra.mxu0 %v341
    %416 = vmatpush.msra.mxu0 %v340
    %417 = vmatpush.msra.mxu0 %v339
    %418 = vmatpush.msra.mxu0 %v338
    %419 = vmatpush.msra.mxu0 %v337
    %420 = vmatpush.msra.mxu0 %v336
    %421 = vmatmul.f32.gmra.mxu0 %v394
    %v422 = vpop.f32.mrf.mxu0
    %v423 = vadd.f32 %v346, %v422
    %424 = vmatmul.f32.gmra.mxu0 %v397
    %v425 = vpop.f32.mrf.mxu0
    %v426 = vadd.f32 %v346, %v425
    %427 = vmatmul.f32.gmra.mxu0 %v400
    %v428 = vpop.f32.mrf.mxu0
    %v429 = vadd.f32 %v346, %v428
    %430 = vmatmul.f32.gmra.mxu0 %v403
    %v431 = vpop.f32.mrf.mxu0
    %v432 = vadd.f32 %v346, %v431
    %433 = vdwg.mxu0
    %v434 = vmax.f32 %v423, 0.0
    %v435 = vmax.f32 %v426, 0.0
    %v436 = vmax.f32 %v429, 0.0
    %v437 = vmax.f32 %v432, 0.0
    %438 = vst [vmem:[#allocation2] sm:$0xff] %v389
    %439 = vst [vmem:[#allocation2 + $0x8] sm:$0xff] %v390
    %440 = vst [vmem:[#allocation2 + $0x10] sm:$0xff] %v391
    %441 = vst [vmem:[#allocation2 + $0x18] sm:$0xff] %v392
    %442 = vst [vmem:[#allocation2 + $0x20] sm:$0xff] %v434
    %443 = vst [vmem:[#allocation2 + $0x28] sm:$0xff] %v435
    %444 = vst [vmem:[#allocation2 + $0x30] sm:$0xff] %v436
    %445 = vst [vmem:[#allocation2 + $0x38] sm:$0xff] %v437
    // Predicated region
    $region30: #{tpu_custom_call.1} parent=1 // pred_check
      _
    $region31: #{tpu_custom_call.1} parent=1 // pred_check_branch
      %447 = sbr.rel (0) target = $region33
    $region32: #{tpu_custom_call.1} parent=1 // pred_region
      _
    $region33: #{tpu_custom_call.1} parent=1 // pred_fallthru
      _
    // Predicated region
    $region34: #{tpu_custom_call.1} parent=1 // pred_check
      _
    $region35: #{tpu_custom_call.1} parent=1 // pred_check_branch
      %449 = sbr.rel (0) target = $region37
    $region36: #{tpu_custom_call.1} parent=1 // pred_region
      %451 = vsyncadd [#allocation3], 0
      %s452 = sshll.u32 [#allocation2], 4
      %s453 = int_to_ptr.vmem [resolvable:$true] %s452
      %s454 = sshll.u32 %s8, 4
      %s455 = int_to_ptr.hbm [resolvable:$true] %s454
      %460 = dma.vmem_to_hbm [thread:$0]  %s453, 1024, %s455, [#allocation3], 128, 128, 8
    $region37: #{tpu_custom_call.1} parent=1 // pred_fallthru
      _
    // Predicated region
    $region38: #{tpu_custom_call.1} parent=1 // pred_check
      _
    $region39: #{tpu_custom_call.1} parent=1 // pred_check_branch
      %462 = sbr.rel (0) target = $region41
    $region40: #{tpu_custom_call.1} parent=1 // pred_region
      _
    $region41: #{tpu_custom_call.1} parent=1 // pred_fallthru
      _
    // Predicated region
    $region42: #{tpu_custom_call.1} parent=1 // pred_check
      _
    $region43: #{tpu_custom_call.1} parent=1 // pred_check_branch
      %464 = sbr.rel (0) target = $region45
    $region44: #{tpu_custom_call.1} parent=1 // pred_region
      %466 = dma.done [#allocation3], 1024
    $region45: #{tpu_custom_call.1} parent=1 // pred_fallthru
      _
    %467 = vsyncpa [#allocation3], 1

</llo_original>
